<compile_context>
chip_gen: v5e
topology: v5e:2x2
jax: 0.10.0
libtpu: 0.0.40
codegen_flags: <defaults>
</compile_context>

<pallas_src>
import math
import functools

import jax
import jax.numpy as jnp
from jax import lax
from jax.experimental import pallas as pl
from jax.experimental.pallas import tpu as pltpu


def _attention_kernel(x_ref, w_ref, wp_ref, o_ref, *, T, C, H, n_unmasked):
    DH = C // H
    scale = 1.0 / math.sqrt(DH)

    x_aug = x_ref[...]                       # (C+1, T): [x^T ; ones]
    w_slab = w_ref[...]                      # (4C, C+1): [[Wqkv^T, bqkv]; [0, bproj]]

    # One fused MXU op: q/k/v projections (+ biases via the ones row of x_aug)
    # and the output-projection bias broadcast along T (rows 3C:4C).
    qkvb = jnp.dot(w_slab, x_aug, preferred_element_type=jnp.float32)   # (4C, T)

    # Sublane slices and sublane-splitting reshapes: tile-aligned, no lane moves.
    q3 = qkvb[0 * C:1 * C, :].reshape(H, DH, T)      # (H, DH, T)
    k3 = qkvb[1 * C:2 * C, :].reshape(H, DH, T)
    v3 = qkvb[2 * C:3 * C, :].reshape(H, DH, T)
    bproj_t = qkvb[3 * C:4 * C, :]                   # (C, T): bproj broadcast over T

    # Additive causal bias.  The grid axis handles batching, so this is purely
    # causal (no div/mod).  Finite -1e30 instead of -inf: no inf-inf NaN hazard.
    qpos = lax.broadcasted_iota(jnp.int32, (T, T), 0)
    kpos = lax.broadcasted_iota(jnp.int32, (T, T), 1)
    allowed = kpos <= qpos
    if n_unmasked > 0:
        allowed = allowed | ((qpos < n_unmasked) & (kpos < n_unmasked))
    bias = jnp.where(allowed, jnp.float32(0.0), jnp.float32(-1e30))     # (T, T)

    # Scores, batched over all heads with one dot_general.  q3 is feature-major
    # (H, DH, T); a minor-dim swap puts it in 'hqd' form so both einsums below
    # are the canonical batched-matmul contraction patterns.
    qh = jnp.swapaxes(q3, 1, 2)                                         # (H, T, DH)
    s = jnp.einsum("hqd,hdk->hqk", qh, k3,
                   preferred_element_type=jnp.float32)                  # (H, T, T)
    s = s * scale + bias[None, :, :]

    # Softmax over keys (lane axis), batched over every head/query at once.
    s_max = jnp.max(s, axis=-1, keepdims=True)
    p = jnp.exp(s - s_max)
    denom = jnp.sum(p, axis=-1, keepdims=True)
    p = p * pl.reciprocal(denom, approx=False)       # exact per review note
    # TODO(synk): attention dropout (attn_pdrop) is identity in eval mode.

    # Context back in feature-major layout, batched over heads.
    ctx = jnp.einsum("hdk,hqk->hdq", v3, p,
                     preferred_element_type=jnp.float32)                # (H, DH, T)

    # Output projection: merge heads back onto sublanes (free reshape) and run
    # ONE K-accumulated (C, C) @ (C, T) matmul — no per-head result pops/adds.
    ctx_flat = ctx.reshape(C, T)                                        # (C, T)
    y = jnp.dot(wp_ref[...], ctx_flat,
                preferred_element_type=jnp.float32)                     # (C, T)
    # TODO(synk): residual dropout (resid_pdrop) is identity in eval mode.
    o_ref[...] = y + bproj_t


def recausal_self_attention(x, params, *, n_head, n_unmasked=0):
    """x: (B, T, C) float32.  Returns (B, T, C).  Eval-mode forward."""
    B, T, C = x.shape
    H = n_head
    assert C % H == 0

    # ---- Host-side layout plumbing (plain XLA ops outside the kernel) ------
    # Feature-major activations plus a ones row that absorbs the q/k/v biases.
    x_aug = jnp.concatenate(
        [jnp.swapaxes(x, 1, 2), jnp.ones((B, 1, T), x.dtype)], axis=1)  # (B, C+1, T)

    # Weight slab: [[Wqkv^T, bqkv]; [0, bproj]]  -> (4C, C+1).
    w_top = jnp.concatenate(
        [params["wqkv"].T, params["bqkv"].reshape(3 * C, 1)], axis=1)   # (3C, C+1)
    w_bot = jnp.concatenate(
        [jnp.zeros((C, C), jnp.float32), params["bproj"].reshape(C, 1)], axis=1)
    w_slab = jnp.concatenate([w_top, w_bot], axis=0)                    # (4C, C+1)

    # Transposed output-projection weights.
    wp_t = params["wproj"].T                                            # (C, C)

    kernel = functools.partial(_attention_kernel, T=T, C=C, H=H,
                               n_unmasked=n_unmasked)
    out_t = pl.pallas_call(
        kernel,
        out_shape=jax.ShapeDtypeStruct((B, C, T), jnp.float32),
        grid=(B,),
        in_specs=[
            pl.BlockSpec((None, C + 1, T), lambda b: (b, 0, 0)),   # per-batch x
            pl.BlockSpec((4 * C, C + 1), lambda b: (0, 0)),        # resident weights
            pl.BlockSpec((C, C), lambda b: (0, 0)),                # resident weights
        ],
        out_specs=pl.BlockSpec((None, C, T), lambda b: (b, 0, 0)),
        compiler_params=pltpu.CompilerParams(
            dimension_semantics=("parallel",)),                    # 2nd TC on v7x
    )(x_aug, w_slab, wp_t)
    return jnp.swapaxes(out_t, 1, 2)                                    # (B, T, C)


def recausal_self_attention_ref(x, params, *, n_head, n_unmasked=0):
    """Pure-JAX reference mirroring the PyTorch forward in eval mode."""
    B, T, C = x.shape
    DH = C // n_head
    wqkv, bqkv = params["wqkv"], params["bqkv"]
    q = x @ wqkv[:, 0 * C:1 * C] + bqkv[0, 0 * C:1 * C]
    k = x @ wqkv[:, 1 * C:2 * C] + bqkv[0, 1 * C:2 * C]
    v = x @ wqkv[:, 2 * C:3 * C] + bqkv[0, 2 * C:3 * C]

    def split(t):  # (B, T, C) -> (B, H, T, DH)
        return t.reshape(B, T, n_head, DH).transpose(0, 2, 1, 3)

    qh, kh, vh = split(q), split(k), split(v)
    att = jnp.einsum("bhqd,bhkd->bhqk", qh, kh) * (1.0 / math.sqrt(DH))
    mask = jnp.tril(jnp.ones((T, T), jnp.float32))
    if n_unmasked > 0:
        mask = mask.at[:n_unmasked, :n_unmasked].set(1.0)
    att = jnp.where(mask[None, None, :, :] == 0.0, -jnp.inf, att)
    att = jax.nn.softmax(att, axis=-1)
    y = jnp.einsum("bhqk,bhkd->bhqd", att, vh)
    y = y.transpose(0, 2, 1, 3).reshape(B, T, C)
    return y @ params["wproj"] + params["bproj"][0]


def init_params(key, C):
    keys = jax.random.split(key, 4)
    scale = 0.02
    return {
        # nn.Linear weights pre-transposed to (in_features, out_features);
        # query/key/value packed as [Wq | Wk | Wv] along the output axis.
        "wqkv": scale * jax.random.normal(keys[0], (C, 3 * C), jnp.float32),
        "bqkv": scale * jax.random.normal(keys[1], (1, 3 * C), jnp.float32),
        "wproj": scale * jax.random.normal(keys[2], (C, C), jnp.float32),
        "bproj": scale * jax.random.normal(keys[3], (1, C), jnp.float32),
    }


if __name__ == "__main__":
    B, T, C, H = 2, 8, 32, 4      # batch, seq (block_size >= T), n_embd, n_head

    key = jax.random.PRNGKey(0)
    kp, kx = jax.random.split(key)
    params = init_params(kp, C)
    x = jax.random.normal(kx, (B, T, C), jnp.float32)

    out = recausal_self_attention(x, params, n_head=H)
    out = jax.block_until_ready(out)

    ref = recausal_self_attention_ref(x, params, n_head=H)
    assert out.shape == (B, T, C)
    err = float(jnp.max(jnp.abs(out - ref)))
    assert err < 1e-3, err

    print("KERNEL_OK")
</pallas_src>

<mosaic_0001>
module attributes {stable_mosaic.version = 11 : i64} {
  func.func @_attention_kernel(%arg0: i32, %arg1: memref<1x33x8xf32, #tpu.memory_space<vmem>>, %arg2: memref<128x33xf32, #tpu.memory_space<vmem>>, %arg3: memref<32x32xf32, #tpu.memory_space<vmem>>, %arg4: memref<1x32x8xf32, #tpu.memory_space<vmem>>) attributes {dimension_semantics = [#tpu.dimension_semantics<parallel>], iteration_bounds = array<i64: 2>, scalar_prefetch = 0 : i64, scratch_operands = 0 : i64, tpu.core_type = #tpu.core_type<tc>, window_params = [{transform_indices = @transform_0, window_bounds = array<i64: 1, 33, 8>}, {pipeline_mode = #tpu.pipeline_mode<synchronous>, transform_indices = @transform_1, window_bounds = array<i64: 128, 33>}, {pipeline_mode = #tpu.pipeline_mode<synchronous>, transform_indices = @transform_2, window_bounds = array<i64: 32, 32>}, {transform_indices = @transform_3, window_bounds = array<i64: 1, 32, 8>}]} {
    %c0 = arith.constant 0 : index
    %c0_0 = arith.constant 0 : index
    %c0_1 = arith.constant 0 : index
    %0 = vector.load %arg1[%c0, %c0_0, %c0_1] : memref<1x33x8xf32, #tpu.memory_space<vmem>>, vector<1x33x8xf32>
    %1 = vector.shape_cast %0 : vector<1x33x8xf32> to vector<33x8xf32>
    %c0_2 = arith.constant 0 : index
    %c0_3 = arith.constant 0 : index
    %2 = vector.load %arg2[%c0_2, %c0_3] : memref<128x33xf32, #tpu.memory_space<vmem>>, vector<128x33xf32>
    %cst = arith.constant dense<0.000000e+00> : vector<128x8xf32>
    %3 = tpu.matmul %2, %1, %cst {dimension_numbers = #tpu.dot_dimension_numbers<[1], [0], [0], [1], [0, 0, 1, 1], [], []>} : vector<128x33xf32>, vector<33x8xf32>, vector<128x8xf32> -> vector<128x8xf32>
    %4 = vector.extract_strided_slice %3 {offsets = [0, 0], sizes = [32, 8], strides = [1, 1]} : vector<128x8xf32> to vector<32x8xf32>
    %5 = vector.shape_cast %4 : vector<32x8xf32> to vector<4x8x8xf32>
    %6 = vector.extract_strided_slice %3 {offsets = [32, 0], sizes = [32, 8], strides = [1, 1]} : vector<128x8xf32> to vector<32x8xf32>
    %7 = vector.shape_cast %6 : vector<32x8xf32> to vector<4x8x8xf32>
    %8 = vector.extract_strided_slice %3 {offsets = [64, 0], sizes = [32, 8], strides = [1, 1]} : vector<128x8xf32> to vector<32x8xf32>
    %9 = vector.shape_cast %8 : vector<32x8xf32> to vector<4x8x8xf32>
    %10 = vector.extract_strided_slice %3 {offsets = [96, 0], sizes = [32, 8], strides = [1, 1]} : vector<128x8xf32> to vector<32x8xf32>
    %11 = tpu.iota {dimensions = array<i32: 0>} : vector<8x8xi32>
    %12 = tpu.iota {dimensions = array<i32: 1>} : vector<8x8xi32>
    %13 = arith.cmpi sle, %12, %11 : vector<8x8xi32>
    %cst_4 = arith.constant 0.000000e+00 : f32
    %cst_5 = arith.constant -1.000000e+30 : f32
    %14 = vector.broadcast %cst_4 : f32 to vector<8x8xf32>
    %15 = vector.broadcast %cst_5 : f32 to vector<8x8xf32>
    %16 = arith.select %13, %14, %15 : vector<8x8xi1>, vector<8x8xf32>
    %17 = tpu.transpose %5, [0, 2, 1] : vector<4x8x8xf32> -> vector<4x8x8xf32>
    "tpu.trace_start"() <{level = 10 : i32, message = "hqd,hdk->hqk"}> : () -> ()
    %cst_6 = arith.constant dense<0.000000e+00> : vector<4x8x8xf32>
    %18 = tpu.matmul %17, %7, %cst_6 {dimension_numbers = #tpu.dot_dimension_numbers<[2], [1], [1], [2], [0, 0, 0, 1, 1, 2], [0], [0]>} : vector<4x8x8xf32>, vector<4x8x8xf32>, vector<4x8x8xf32> -> vector<4x8x8xf32>
    "tpu.trace_stop"() : () -> ()
    %cst_7 = arith.constant 0.353553385 : f32
    %19 = vector.broadcast %cst_7 : f32 to vector<4x8x8xf32>
    %20 = arith.mulf %18, %19 : vector<4x8x8xf32>
    %21 = vector.shape_cast %16 : vector<8x8xf32> to vector<1x8x8xf32>
    %22 = vector.broadcast %21 : vector<1x8x8xf32> to vector<4x8x8xf32>
    %23 = arith.addf %20, %22 : vector<4x8x8xf32>
    %cst_8 = arith.constant dense<0xFF800000> : vector<4x8xf32>
    %24 = vector.multi_reduction <maximumf>, %23, %cst_8 [2] : vector<4x8x8xf32> to vector<4x8xf32>
    %25 = vector.shape_cast %24 : vector<4x8xf32> to vector<4x8x1xf32>
    %26 = vector.broadcast %25 : vector<4x8x1xf32> to vector<4x8x8xf32>
    %27 = arith.subf %23, %26 : vector<4x8x8xf32>
    %28 = math.exp %27 : vector<4x8x8xf32>
    %cst_9 = arith.constant dense<0.000000e+00> : vector<4x8xf32>
    %29 = vector.multi_reduction <add>, %28, %cst_9 [2] : vector<4x8x8xf32> to vector<4x8xf32>
    %30 = vector.shape_cast %29 : vector<4x8xf32> to vector<4x8x1xf32>
    %31 = tpu.reciprocal %30 : vector<4x8x1xf32> -> vector<4x8x1xf32>
    %32 = vector.broadcast %31 : vector<4x8x1xf32> to vector<4x8x8xf32>
    %33 = arith.mulf %28, %32 : vector<4x8x8xf32>
    "tpu.trace_start"() <{level = 10 : i32, message = "hdk,hqk->hdq"}> : () -> ()
    %cst_10 = arith.constant dense<0.000000e+00> : vector<4x8x8xf32>
    %34 = tpu.matmul %9, %33, %cst_10 {dimension_numbers = #tpu.dot_dimension_numbers<[2], [2], [1], [1], [0, 0, 0, 1, 1, 1], [0], [0]>} : vector<4x8x8xf32>, vector<4x8x8xf32>, vector<4x8x8xf32> -> vector<4x8x8xf32>
    "tpu.trace_stop"() : () -> ()
    %35 = vector.shape_cast %34 : vector<4x8x8xf32> to vector<32x8xf32>
    %c0_11 = arith.constant 0 : index
    %c0_12 = arith.constant 0 : index
    %36 = vector.load %arg3[%c0_11, %c0_12] : memref<32x32xf32, #tpu.memory_space<vmem>>, vector<32x32xf32>
    %cst_13 = arith.constant dense<0.000000e+00> : vector<32x8xf32>
    %37 = tpu.matmul %36, %35, %cst_13 {dimension_numbers = #tpu.dot_dimension_numbers<[1], [0], [0], [1], [0, 0, 1, 1], [], []>} : vector<32x32xf32>, vector<32x8xf32>, vector<32x8xf32> -> vector<32x8xf32>
    %38 = arith.addf %37, %10 : vector<32x8xf32>
    %c0_14 = arith.constant 0 : index
    %c0_15 = arith.constant 0 : index
    %c0_16 = arith.constant 0 : index
    %39 = vector.load %arg4[%c0_14, %c0_15, %c0_16] : memref<1x32x8xf32, #tpu.memory_space<vmem>>, vector<1x32x8xf32>
    %40 = vector.shape_cast %39 : vector<1x32x8xf32> to vector<32x8xf32>
    %41 = vector.shape_cast %38 : vector<32x8xf32> to vector<1x32x8xf32>
    tpu.vector_store %arg4[%c0_14, %c0_15, %c0_16], %41 {strides = array<i32>} : memref<1x32x8xf32, #tpu.memory_space<vmem>>, vector<1x32x8xf32>,
    return
  }
  func.func @transform_0(%arg0: i32) -> (i32, i32, i32) {
    %c0_i32 = arith.constant 0 : i32
    %c0_i32_0 = arith.constant 0 : i32
    %c0_i32_1 = arith.constant 0 : i32
    return %arg0, %c0_i32, %c0_i32_0 : i32, i32, i32
  }
  func.func @transform_1(%arg0: i32) -> (i32, i32) {
    %c0_i32 = arith.constant 0 : i32
    %c0_i32_0 = arith.constant 0 : i32
    %c0_i32_1 = arith.constant 0 : i32
    return %c0_i32, %c0_i32_0 : i32, i32
  }
  func.func @transform_2(%arg0: i32) -> (i32, i32) {
    %c0_i32 = arith.constant 0 : i32
    %c0_i32_0 = arith.constant 0 : i32
    %c0_i32_1 = arith.constant 0 : i32
    return %c0_i32, %c0_i32_0 : i32, i32
  }
  func.func @transform_3(%arg0: i32) -> (i32, i32, i32) {
    %c0_i32 = arith.constant 0 : i32
    %c0_i32_0 = arith.constant 0 : i32
    %c0_i32_1 = arith.constant 0 : i32
    return %arg0, %c0_i32, %c0_i32_0 : i32, i32, i32
  }
}

</mosaic_0001>

<llo_original>
// kernel: tpu_custom_call.1
$region0: #{tpu_custom_call.1}
  #allocation0 [shape = 'u32[]', space=smem, size = 0x4, offset = 0x4, fixed_abs, tag = 'smem constant byte address 0x4 - core index']
  #allocation1 [shape = 'u32[72,128]{1,0:T(1,128)}', space=vmem, size = 0x9000, scoped, tag = 'internal scratch']
  %s0 = inlined_call_operand.vmem [shape: f32[2,33,8], index: 0, kind: input, shape index: {}]
  %s1 = inlined_call_operand.vmem [shape: f32[128,33], index: 1, kind: input, shape index: {}]
  %s2 = inlined_call_operand.vmem [shape: f32[32,32], index: 2, kind: input, shape index: {}]
  %s3 = inlined_call_operand.vmem [shape: f32[2,32,8], index: 3, kind: output, shape index: {}]
  %s4 = sld [smem:[#allocation0]]
  $region45: #{tpu_custom_call.1} parent=0
    _
  %s6 = ssub.s32 1, %s4
  %s7 = scalar_select 0, %s6, %s4
  loop: start=0, step=1, limit=4
  $region2: #{tpu_custom_call.1} parent=0 // loop_pre_header
    _
  $region3: #{tpu_custom_call.1} parent=0 // loop_header
    %s9 = sphi 0, %s13
    %p10 = scmp.ge.s32.totalorder %s9, 4
    %s19 = sphi 0, %s21
    %s22 = sphi 0, %s19
    %s23 = sphi 0, %s22
    %s39 = sphi 0, %s23
    %s43 = sphi 0, %s43
    %s45 = sphi 0, %s43
    %s46 = sphi 0, %s45
    %s60 = sphi 0, %s46
    %s64 = sphi 0, %s64
    %s66 = sphi 0, %s64
    %s67 = sphi 0, %s66
    %s81 = sphi 0, %s67
    %s87 = sphi 0, %s89
    %s90 = sphi 0, %s87
    %s91 = sphi 0, %s90
    %s107 = sphi 0, %s91
  $region4: #{tpu_custom_call.1} parent=0 // loop_header_branch
    %12 = sbr.rel (%p10) target = $region8
  $region5: #{tpu_custom_call.1} parent=0 // loop_body
    %s14 = ssub.s32 %s9, 1
    %s15 = ssub.s32 %s9, 2
    %s16 = sadd.s32 %s9, 1
    %s17 = ssub.s32 %s9, %s16
    %p18 = scmp.eq.s32.totalorder %s17, 0
    %s20 = sadd.s32 %s19, 1
    %s21 = scalar_select %p18, %s19, %s20
    %p24 = pneg %p18
    %p25 = scmp.eq.s32.totalorder %s9, 1
    %p26 = por %p24, %p25
    %p27 = scmp.ne.s32.totalorder %s19, %s22
    %p28 = scmp.eq.s32.totalorder %s9, 0
    %p29 = por %p27, %p28
    %p30 = scmp.ne.s32.totalorder %s19, %s22
    %p31 = scmp.eq.s32.totalorder %s14, 1
    %p32 = por %p30, %p31
    %p33 = scmp.ne.s32.totalorder %s22, %s23
    %p34 = scmp.eq.s32.totalorder %s14, 0
    %p35 = por %p33, %p34
    %p36 = scmp.ne.s32.totalorder %s22, %s23
    %p37 = scmp.eq.s32.totalorder %s15, 1
    %p38 = por %p36, %p37
    %p40 = scmp.ne.s32.totalorder %s23, %s39
    %p41 = scmp.eq.s32.totalorder %s15, 0
    %p42 = por %p40, %p41
    %s44 = sadd.s32 %s43, 1
    %p47 = scmp.eq.s32.totalorder %s9, 1
    %p48 = scmp.ne.s32.totalorder %s43, %s45
    %p49 = scmp.eq.s32.totalorder %s9, 0
    %p50 = por %p48, %p49
    %p51 = scmp.ne.s32.totalorder %s43, %s45
    %p52 = scmp.eq.s32.totalorder %s14, 1
    %p53 = por %p51, %p52
    %p54 = scmp.ne.s32.totalorder %s45, %s46
    %p55 = scmp.eq.s32.totalorder %s14, 0
    %p56 = por %p54, %p55
    %p57 = scmp.ne.s32.totalorder %s45, %s46
    %p58 = scmp.eq.s32.totalorder %s15, 1
    %p59 = por %p57, %p58
    %p61 = scmp.ne.s32.totalorder %s46, %s60
    %p62 = scmp.eq.s32.totalorder %s15, 0
    %p63 = por %p61, %p62
    %s65 = sadd.s32 %s64, 1
    %p68 = scmp.eq.s32.totalorder %s9, 1
    %p69 = scmp.ne.s32.totalorder %s64, %s66
    %p70 = scmp.eq.s32.totalorder %s9, 0
    %p71 = por %p69, %p70
    %p72 = scmp.ne.s32.totalorder %s64, %s66
    %p73 = scmp.eq.s32.totalorder %s14, 1
    %p74 = por %p72, %p73
    %p75 = scmp.ne.s32.totalorder %s66, %s67
    %p76 = scmp.eq.s32.totalorder %s14, 0
    %p77 = por %p75, %p76
    %p78 = scmp.ne.s32.totalorder %s66, %s67
    %p79 = scmp.eq.s32.totalorder %s15, 1
    %p80 = por %p78, %p79
    %p82 = scmp.ne.s32.totalorder %s67, %s81
    %p83 = scmp.eq.s32.totalorder %s15, 0
    %p84 = por %p82, %p83
    %s85 = ssub.s32 %s9, %s16
    %p86 = scmp.eq.s32.totalorder %s85, 0
    %s88 = sadd.s32 %s87, 1
    %s89 = scalar_select %p86, %s87, %s88
    %p92 = pneg %p86
    %p93 = scmp.eq.s32.totalorder %s9, 1
    %p94 = por %p92, %p93
    %p95 = scmp.ne.s32.totalorder %s87, %s90
    %p96 = scmp.eq.s32.totalorder %s9, 0
    %p97 = por %p95, %p96
    %p98 = scmp.ne.s32.totalorder %s87, %s90
    %p99 = scmp.eq.s32.totalorder %s14, 1
    %p100 = por %p98, %p99
    %p101 = scmp.ne.s32.totalorder %s90, %s91
    %p102 = scmp.eq.s32.totalorder %s14, 0
    %p103 = por %p101, %p102
    %p104 = scmp.ne.s32.totalorder %s90, %s91
    %p105 = scmp.eq.s32.totalorder %s15, 1
    %p106 = por %p104, %p105
    %p108 = scmp.ne.s32.totalorder %s91, %s107
    %p109 = scmp.eq.s32.totalorder %s15, 0
    %p110 = por %p108, %p109
    %p111 = scmp.le.s32.totalorder 1, %s9
    %p112 = scmp.lt.s32.totalorder %s9, 3
    %p113 = pnand %p111, %p112
    %p114 = pneg %p113
    // Predicated region
    $region9: #{tpu_custom_call.1} parent=5 // pred_check
      _
    $region10: #{tpu_custom_call.1} parent=5 // pred_check_branch
      %116 = sbr.rel (%p113) target = $region12
    $region11: #{tpu_custom_call.1} parent=5 // pred_region
      %s117 = ssub.s32 %s9, 1
      // Predicated region
      $region13: #{tpu_custom_call.1} parent=11 // pred_check
        %p118 = pneg %p56
      $region14: #{tpu_custom_call.1} parent=11 // pred_check_branch
        %120 = sbr.rel (%p118) target = $region16
      $region15: #{tpu_custom_call.1} parent=11 // pred_region
        _
      $region16: #{tpu_custom_call.1} parent=11 // pred_fallthru
        _
      // Predicated region
      $region17: #{tpu_custom_call.1} parent=11 // pred_check
        %p121 = pneg %p77
      $region18: #{tpu_custom_call.1} parent=11 // pred_check_branch
        %123 = sbr.rel (%p121) target = $region20
      $region19: #{tpu_custom_call.1} parent=11 // pred_region
        _
      $region20: #{tpu_custom_call.1} parent=11 // pred_fallthru
        _
    $region12: #{tpu_custom_call.1} parent=5 // pred_fallthru
      _
    %p124 = scmp.lt.s32.totalorder %s9, 2
    // Predicated region
    $region21: #{tpu_custom_call.1} parent=5 // pred_check
      %p125 = pneg %p124
    $region22: #{tpu_custom_call.1} parent=5 // pred_check_branch
      %127 = sbr.rel (%p125) target = $region24
    $region23: #{tpu_custom_call.1} parent=5 // pred_region
      // Predicated region
      $region25: #{tpu_custom_call.1} parent=23 // pred_check
        %p128 = pneg %p29
      $region26: #{tpu_custom_call.1} parent=23 // pred_check_branch
        %130 = sbr.rel (%p128) target = $region28
      $region27: #{tpu_custom_call.1} parent=23 // pred_region
        %p131 = scmp.lt.s32.totalorder %s9, 1
        %s132 = scalar_select %p131, %s9, 1
        %s133 = smul.addr %s132, 5
        %s134 = smul.addr %s133, 8
        %s135 = scalar_lea.vmem %s0, %s134
      $region28: #{tpu_custom_call.1} parent=23 // pred_fallthru
        _
    $region24: #{tpu_custom_call.1} parent=5 // pred_fallthru
      _
    %p136 = scmp.le.s32.totalorder 1, %s9
    %p137 = scmp.lt.s32.totalorder %s9, 3
    %p138 = pnand %p136, %p137
    %p139 = pneg %p138
    // Predicated region
    $region29: #{tpu_custom_call.1} parent=5 // pred_check
      _
    $region30: #{tpu_custom_call.1} parent=5 // pred_check_branch
      %141 = sbr.rel (%p138) target = $region32
    $region31: #{tpu_custom_call.1} parent=5 // pred_region
      %s142 = ssub.s32 %s9, 1
      %p143 = scmp.lt.s32.totalorder %s14, 1
      %s144 = scalar_select %p143, %s14, 1
      %s145 = smul.addr %s144, 5
      %s146 = smul.addr %s145, 8
      %s147 = scalar_lea.vmem %s0, %s146
      %p148 = pneg %p35
      %p149 = pneg %p32
      %p150 = pneg %p56
      %p151 = pneg %p53
      %p152 = pneg %p77
      %p153 = pneg %p74
      %p154 = pneg %p103
      %p155 = pneg %p100
      %p156 = scmp.lt.s32.totalorder %s14, 1
      %s157 = scalar_select %p156, %s14, 1
      %s158 = smul.addr %s157, 4
      %s159 = smul.addr %s158, 8
      %s160 = scalar_lea.vmem %s3, %s159
      %p161 = scmp.lt.s32.totalorder %s14, 1
      %s162 = scalar_select %p161, %s14, 1
      %s163 = smul.addr %s162, 5
      %s164 = smul.addr %s163, 8
      %s165 = scalar_lea.vmem %s0, %s164
      %p166 = scmp.lt.s32.totalorder %s14, 1
      %s167 = scalar_select %p166, %s14, 1
      %s168 = smul.addr %s167, 4
      %s169 = smul.addr %s168, 8
      %s170 = scalar_lea.vmem %s3, %s169
      %v171 = vld [vmem:[%s165] sm:$0xff]
      %v172 = vld [vmem:[%s165 + $0x8] sm:$0xff]
      %v173 = vld [vmem:[%s165 + $0x10] sm:$0xff]
      %v174 = vld [vmem:[%s165 + $0x18] sm:$0xff]
      %v175 = vld [vmem:[%s165 + $0x20] sm:$0x1]
      %v176 = vld [vmem:[%s1] sm:$0xff]
      %v177 = vld [vmem:[%s1 + $0x8] sm:$0xff]
      %v178 = vld [vmem:[%s1 + $0x10] sm:$0xff]
      %v179 = vld [vmem:[%s1 + $0x18] sm:$0xff]
      %v180 = vld [vmem:[%s1 + $0x20] sm:$0xff]
      %v181 = vld [vmem:[%s1 + $0x28] sm:$0xff]
      %v182 = vld [vmem:[%s1 + $0x30] sm:$0xff]
      %v183 = vld [vmem:[%s1 + $0x38] sm:$0xff]
      %v184 = vld [vmem:[%s1 + $0x40] sm:$0xff]
      %v185 = vld [vmem:[%s1 + $0x48] sm:$0xff]
      %v186 = vld [vmem:[%s1 + $0x50] sm:$0xff]
      %v187 = vld [vmem:[%s1 + $0x58] sm:$0xff]
      %v188 = vld [vmem:[%s1 + $0x60] sm:$0xff]
      %v189 = vld [vmem:[%s1 + $0x68] sm:$0xff]
      %v190 = vld [vmem:[%s1 + $0x70] sm:$0xff]
      %v191 = vld [vmem:[%s1 + $0x78] sm:$0xff]
      %vm192 = vcmask 269312
      %v194 = vsel %vm192, %v176, 0
      %v197 = vsel %vm192, %v177, 0
      %v200 = vsel %vm192, %v178, 0
      %v203 = vsel %vm192, %v179, 0
      %v206 = vsel %vm192, %v180, 0
      %v209 = vsel %vm192, %v181, 0
      %v212 = vsel %vm192, %v182, 0
      %v215 = vsel %vm192, %v183, 0
      %v218 = vsel %vm192, %v184, 0
      %v221 = vsel %vm192, %v185, 0
      %v224 = vsel %vm192, %v186, 0
      %v227 = vsel %vm192, %v187, 0
      %v230 = vsel %vm192, %v188, 0
      %v233 = vsel %vm192, %v189, 0
      %v236 = vsel %vm192, %v190, 0
      %v239 = vsel %vm192, %v191, 0
      %vm241 = vcmask 1040384
      %v243 = vsel %vm241, %v175, 0
      %245 = vmatpush.msra.mxu0 0.0
      %246 = vmatpush.msra.mxu0 0.0
      %247 = vmatpush.msra.mxu0 0.0
      %248 = vmatpush.msra.mxu0 0.0
      %249 = vmatpush.msra.mxu0 0.0
      %250 = vmatpush.msra.mxu0 0.0
      %251 = vmatpush.msra.mxu0 0.0
      %252 = vmatpush.msra.mxu0 0.0
      %253 = vmatpush.msra.mxu0 0.0
      %254 = vmatpush.msra.mxu0 0.0
      %255 = vmatpush.msra.mxu0 0.0
      %256 = vmatpush.msra.mxu0 %v243
      %257 = vmatpush.msra.mxu0 %v174
      %258 = vmatpush.msra.mxu0 %v173
      %259 = vmatpush.msra.mxu0 %v172
      %260 = vmatpush.msra.mxu0 %v171
      %261 = vmatmul.f32.gmra.mxu0 %v194
      %v262 = vpop.f32.mrf.mxu0
      %v263 = vadd.f32 0.0, %v262
      %264 = vmatmul.f32.gmra.mxu0 %v197
      %v265 = vpop.f32.mrf.mxu0
      %v266 = vadd.f32 0.0, %v265
      %267 = vmatmul.f32.gmra.mxu0 %v200
      %v268 = vpop.f32.mrf.mxu0
      %v269 = vadd.f32 0.0, %v268
      %270 = vmatmul.f32.gmra.mxu0 %v203
      %v271 = vpop.f32.mrf.mxu0
      %v272 = vadd.f32 0.0, %v271
      %273 = vmatmul.f32.gmra.mxu0 %v206
      %v274 = vpop.f32.mrf.mxu0
      %v275 = vadd.f32 0.0, %v274
      %276 = vmatmul.f32.gmra.mxu0 %v209
      %v277 = vpop.f32.mrf.mxu0
      %v278 = vadd.f32 0.0, %v277
      %279 = vmatmul.f32.gmra.mxu0 %v212
      %v280 = vpop.f32.mrf.mxu0
      %v281 = vadd.f32 0.0, %v280
      %282 = vmatmul.f32.gmra.mxu0 %v215
      %v283 = vpop.f32.mrf.mxu0
      %v284 = vadd.f32 0.0, %v283
      %285 = vmatmul.f32.gmra.mxu0 %v218
      %v286 = vpop.f32.mrf.mxu0
      %v287 = vadd.f32 0.0, %v286
      %288 = vmatmul.f32.gmra.mxu0 %v221
      %v289 = vpop.f32.mrf.mxu0
      %v290 = vadd.f32 0.0, %v289
      %291 = vmatmul.f32.gmra.mxu0 %v224
      %v292 = vpop.f32.mrf.mxu0
      %v293 = vadd.f32 0.0, %v292
      %294 = vmatmul.f32.gmra.mxu0 %v227
      %v295 = vpop.f32.mrf.mxu0
      %v296 = vadd.f32 0.0, %v295
      %297 = vmatmul.f32.gmra.mxu0 %v230
      %v298 = vpop.f32.mrf.mxu0
      %v299 = vadd.f32 0.0, %v298
      %300 = vmatmul.f32.gmra.mxu0 %v233
      %v301 = vpop.f32.mrf.mxu0
      %v302 = vadd.f32 0.0, %v301
      %303 = vmatmul.f32.gmra.mxu0 %v236
      %v304 = vpop.f32.mrf.mxu0
      %v305 = vadd.f32 0.0, %v304
      %306 = vmatmul.f32.gmra.mxu0 %v239
      %v307 = vpop.f32.mrf.mxu0
      %v308 = vadd.f32 0.0, %v307
      %309 = vdwg.mxu0
      %v310 = vlaneseq
      %v311 = vshrl.u32 %v310, 7
      %v312 = vlaneseq
      %v313 = vand.u32 %v312, 127
      %vm314 = vcmp.le.s32.totalorder %v313, %v311
      %v315 = vsel %vm314, 0.0, -1e+30
      %316 = vxpose.xlu0.b32.start [1/16] %v263, 128
      %317 = vxpose.xlu0.b32.cont [2/16] 0.0, 128
      %318 = vxpose.xlu0.b32.cont [3/16] 0.0, 128
      %319 = vxpose.xlu0.b32.cont [4/16] 0.0, 128
      %320 = vxpose.xlu0.b32.cont [5/16] 0.0, 128
      %321 = vxpose.xlu0.b32.cont [6/16] 0.0, 128
      %322 = vxpose.xlu0.b32.cont [7/16] 0.0, 128
      %323 = vxpose.xlu0.b32.cont [8/16] 0.0, 128
      %324 = vxpose.xlu0.b32.cont [9/16] 0.0, 128
      %325 = vxpose.xlu0.b32.cont [10/16] 0.0, 128
      %326 = vxpose.xlu0.b32.cont [11/16] 0.0, 128
      %327 = vxpose.xlu0.b32.cont [12/16] 0.0, 128
      %328 = vxpose.xlu0.b32.cont [13/16] 0.0, 128
      %329 = vxpose.xlu0.b32.cont [14/16] 0.0, 128
      %330 = vxpose.xlu0.b32.cont [15/16] 0.0, 128
      %331 = vxpose.xlu0.b32.end [16/16] 0.0, 128
      %v332 = vpop.trf.xlu0
      %v333 = vpop.trf.xlu0
      %v334 = vpop.trf.xlu0
      %v335 = vpop.trf.xlu0
      %v336 = vpop.trf.xlu0
      %v337 = vpop.trf.xlu0
      %v338 = vpop.trf.xlu0
      %v339 = vpop.trf.xlu0
      %v340 = vpop.trf.xlu0
      %v341 = vpop.trf.xlu0
      %v342 = vpop.trf.xlu0
      %v343 = vpop.trf.xlu0
      %v344 = vpop.trf.xlu0
      %v345 = vpop.trf.xlu0
      %v346 = vpop.trf.xlu0
      %v347 = vpop.trf.xlu0
      %348 = vxpose.xlu0.b32.start [1/16] %v266, 128
      %349 = vxpose.xlu0.b32.cont [2/16] 0.0, 128
      %350 = vxpose.xlu0.b32.cont [3/16] 0.0, 128
      %351 = vxpose.xlu0.b32.cont [4/16] 0.0, 128
      %352 = vxpose.xlu0.b32.cont [5/16] 0.0, 128
      %353 = vxpose.xlu0.b32.cont [6/16] 0.0, 128
      %354 = vxpose.xlu0.b32.cont [7/16] 0.0, 128
      %355 = vxpose.xlu0.b32.cont [8/16] 0.0, 128
      %356 = vxpose.xlu0.b32.cont [9/16] 0.0, 128
      %357 = vxpose.xlu0.b32.cont [10/16] 0.0, 128
      %358 = vxpose.xlu0.b32.cont [11/16] 0.0, 128
      %359 = vxpose.xlu0.b32.cont [12/16] 0.0, 128
      %360 = vxpose.xlu0.b32.cont [13/16] 0.0, 128
      %361 = vxpose.xlu0.b32.cont [14/16] 0.0, 128
      %362 = vxpose.xlu0.b32.cont [15/16] 0.0, 128
      %363 = vxpose.xlu0.b32.end [16/16] 0.0, 128
      %v364 = vpop.trf.xlu0
      %v365 = vpop.trf.xlu0
      %v366 = vpop.trf.xlu0
      %v367 = vpop.trf.xlu0
      %v368 = vpop.trf.xlu0
      %v369 = vpop.trf.xlu0
      %v370 = vpop.trf.xlu0
      %v371 = vpop.trf.xlu0
      %v372 = vpop.trf.xlu0
      %v373 = vpop.trf.xlu0
      %v374 = vpop.trf.xlu0
      %v375 = vpop.trf.xlu0
      %v376 = vpop.trf.xlu0
      %v377 = vpop.trf.xlu0
      %v378 = vpop.trf.xlu0
      %v379 = vpop.trf.xlu0
      %380 = vxpose.xlu0.b32.start [1/16] %v269, 128
      %381 = vxpose.xlu0.b32.cont [2/16] 0.0, 128
      %382 = vxpose.xlu0.b32.cont [3/16] 0.0, 128
      %383 = vxpose.xlu0.b32.cont [4/16] 0.0, 128
      %384 = vxpose.xlu0.b32.cont [5/16] 0.0, 128
      %385 = vxpose.xlu0.b32.cont [6/16] 0.0, 128
      %386 = vxpose.xlu0.b32.cont [7/16] 0.0, 128
      %387 = vxpose.xlu0.b32.cont [8/16] 0.0, 128
      %388 = vxpose.xlu0.b32.cont [9/16] 0.0, 128
      %389 = vxpose.xlu0.b32.cont [10/16] 0.0, 128
      %390 = vxpose.xlu0.b32.cont [11/16] 0.0, 128
      %391 = vxpose.xlu0.b32.cont [12/16] 0.0, 128
      %392 = vxpose.xlu0.b32.cont [13/16] 0.0, 128
      %393 = vxpose.xlu0.b32.cont [14/16] 0.0, 128
      %394 = vxpose.xlu0.b32.cont [15/16] 0.0, 128
      %395 = vxpose.xlu0.b32.end [16/16] 0.0, 128
      %v396 = vpop.trf.xlu0
      %v397 = vpop.trf.xlu0
      %v398 = vpop.trf.xlu0
      %v399 = vpop.trf.xlu0
      %v400 = vpop.trf.xlu0
      %v401 = vpop.trf.xlu0
      %v402 = vpop.trf.xlu0
      %v403 = vpop.trf.xlu0
      %v404 = vpop.trf.xlu0
      %v405 = vpop.trf.xlu0
      %v406 = vpop.trf.xlu0
      %v407 = vpop.trf.xlu0
      %v408 = vpop.trf.xlu0
      %v409 = vpop.trf.xlu0
      %v410 = vpop.trf.xlu0
      %v411 = vpop.trf.xlu0
      %412 = vxpose.xlu0.b32.start [1/16] %v272, 128
      %413 = vxpose.xlu0.b32.cont [2/16] 0.0, 128
      %414 = vxpose.xlu0.b32.cont [3/16] 0.0, 128
      %415 = vxpose.xlu0.b32.cont [4/16] 0.0, 128
      %416 = vxpose.xlu0.b32.cont [5/16] 0.0, 128
      %417 = vxpose.xlu0.b32.cont [6/16] 0.0, 128
      %418 = vxpose.xlu0.b32.cont [7/16] 0.0, 128
      %419 = vxpose.xlu0.b32.cont [8/16] 0.0, 128
      %420 = vxpose.xlu0.b32.cont [9/16] 0.0, 128
      %421 = vxpose.xlu0.b32.cont [10/16] 0.0, 128
      %422 = vxpose.xlu0.b32.cont [11/16] 0.0, 128
      %423 = vxpose.xlu0.b32.cont [12/16] 0.0, 128
      %424 = vxpose.xlu0.b32.cont [13/16] 0.0, 128
      %425 = vxpose.xlu0.b32.cont [14/16] 0.0, 128
      %426 = vxpose.xlu0.b32.cont [15/16] 0.0, 128
      %427 = vxpose.xlu0.b32.end [16/16] 0.0, 128
      %v428 = vpop.trf.xlu0
      %v429 = vpop.trf.xlu0
      %v430 = vpop.trf.xlu0
      %v431 = vpop.trf.xlu0
      %v432 = vpop.trf.xlu0
      %v433 = vpop.trf.xlu0
      %v434 = vpop.trf.xlu0
      %v435 = vpop.trf.xlu0
      %v436 = vpop.trf.xlu0
      %v437 = vpop.trf.xlu0
      %v438 = vpop.trf.xlu0
      %v439 = vpop.trf.xlu0
      %v440 = vpop.trf.xlu0
      %v441 = vpop.trf.xlu0
      %v442 = vpop.trf.xlu0
      %v443 = vpop.trf.xlu0
      %vm444 = vcmask 64512
      %v446 = vsel %vm444, %v332, 0
      %448 = vmatpush.msra.mxu0 0.0
      %449 = vmatpush.msra.mxu0 0.0
      %450 = vmatpush.msra.mxu0 0.0
      %451 = vmatpush.msra.mxu0 0.0
      %452 = vmatpush.msra.mxu0 0.0
      %453 = vmatpush.msra.mxu0 0.0
      %454 = vmatpush.msra.mxu0 0.0
      %455 = vmatpush.msra.mxu0 0.0
      %456 = vmatpush.msra.mxu0 0.0
      %457 = vmatpush.msra.mxu0 0.0
      %458 = vmatpush.msra.mxu0 0.0
      %459 = vmatpush.msra.mxu0 0.0
      %460 = vmatpush.msra.mxu0 0.0
      %461 = vmatpush.msra.mxu0 0.0
      %462 = vmatpush.msra.mxu0 0.0
      %463 = vmatpush.msra.mxu0 %v275
      %464 = vmatmul.f32.gmra.mxu0 %v446
      %v465 = vpop.f32.mrf.mxu0
      %v466 = vadd.f32 0.0, %v465
      %467 = vdwg.mxu0
      %v469 = vsel %vm444, %v364, 0
      %471 = vmatpush.msra.mxu0 0.0
      %472 = vmatpush.msra.mxu0 0.0
      %473 = vmatpush.msra.mxu0 0.0
      %474 = vmatpush.msra.mxu0 0.0
      %475 = vmatpush.msra.mxu0 0.0
      %476 = vmatpush.msra.mxu0 0.0
      %477 = vmatpush.msra.mxu0 0.0
      %478 = vmatpush.msra.mxu0 0.0
      %479 = vmatpush.msra.mxu0 0.0
      %480 = vmatpush.msra.mxu0 0.0
      %481 = vmatpush.msra.mxu0 0.0
      %482 = vmatpush.msra.mxu0 0.0
      %483 = vmatpush.msra.mxu0 0.0
      %484 = vmatpush.msra.mxu0 0.0
      %485 = vmatpush.msra.mxu0 0.0
      %486 = vmatpush.msra.mxu0 %v278
      %487 = vmatmul.f32.gmra.mxu0 %v469
      %v488 = vpop.f32.mrf.mxu0
      %v489 = vadd.f32 0.0, %v488
      %490 = vdwg.mxu0
      %v492 = vsel %vm444, %v396, 0
      %494 = vmatpush.msra.mxu0 0.0
      %495 = vmatpush.msra.mxu0 0.0
      %496 = vmatpush.msra.mxu0 0.0
      %497 = vmatpush.msra.mxu0 0.0
      %498 = vmatpush.msra.mxu0 0.0
      %499 = vmatpush.msra.mxu0 0.0
      %500 = vmatpush.msra.mxu0 0.0
      %501 = vmatpush.msra.mxu0 0.0
      %502 = vmatpush.msra.mxu0 0.0
      %503 = vmatpush.msra.mxu0 0.0
      %504 = vmatpush.msra.mxu0 0.0
      %505 = vmatpush.msra.mxu0 0.0
      %506 = vmatpush.msra.mxu0 0.0
      %507 = vmatpush.msra.mxu0 0.0
      %508 = vmatpush.msra.mxu0 0.0
      %509 = vmatpush.msra.mxu0 %v281
      %510 = vmatmul.f32.gmra.mxu0 %v492
      %v511 = vpop.f32.mrf.mxu0
      %v512 = vadd.f32 0.0, %v511
      %513 = vdwg.mxu0
      %v515 = vsel %vm444, %v428, 0
      %517 = vmatpush.msra.mxu0 0.0
      %518 = vmatpush.msra.mxu0 0.0
      %519 = vmatpush.msra.mxu0 0.0
      %520 = vmatpush.msra.mxu0 0.0
      %521 = vmatpush.msra.mxu0 0.0
      %522 = vmatpush.msra.mxu0 0.0
      %523 = vmatpush.msra.mxu0 0.0
      %524 = vmatpush.msra.mxu0 0.0
      %525 = vmatpush.msra.mxu0 0.0
      %526 = vmatpush.msra.mxu0 0.0
      %527 = vmatpush.msra.mxu0 0.0
      %528 = vmatpush.msra.mxu0 0.0
      %529 = vmatpush.msra.mxu0 0.0
      %530 = vmatpush.msra.mxu0 0.0
      %531 = vmatpush.msra.mxu0 0.0
      %532 = vmatpush.msra.mxu0 %v284
      %533 = vmatmul.f32.gmra.mxu0 %v515
      %v534 = vpop.f32.mrf.mxu0
      %v535 = vadd.f32 0.0, %v534
      %536 = vdwg.mxu0
      %v537 = vmul.f32 %v466, 0.35355338
      %v538 = vmul.f32 %v489, 0.35355338
      %v539 = vmul.f32 %v512, 0.35355338
      %v540 = vmul.f32 %v535, 0.35355338
      %v541 = vadd.f32 %v537, %v315
      %v542 = vadd.f32 %v538, %v315
      %v543 = vadd.f32 %v539, %v315
      %v544 = vadd.f32 %v540, %v315
      %v545 = vsel %vm444, %v541, -inf
      %546 = vmax.xlane.f32.xlu0 %v545
      %v547 = vpop.xlane.xlu0 %546
      %v548 = vsel %vm444, %v542, -inf
      %549 = vmax.xlane.f32.xlu0 %v548
      %v550 = vpop.xlane.xlu0 %549
      %v551 = vsel %vm444, %v543, -inf
      %552 = vmax.xlane.f32.xlu0 %v551
      %v553 = vpop.xlane.xlu0 %552
      %v554 = vsel %vm444, %v544, -inf
      %555 = vmax.xlane.f32.xlu0 %v554
      %v556 = vpop.xlane.xlu0 %555
      %v557 = vsub.f32 %v541, %v547
      %v558 = vsub.f32 %v542, %v550
      %v559 = vsub.f32 %v543, %v553
      %v560 = vsub.f32 %v544, %v556
      %v561 = vmul.f32 %v557, 1.442695
      %v562 = vpow.pop %v561
      %v563 = vmul.f32 %v558, 1.442695
      %v564 = vpow.pop %v563
      %v565 = vmul.f32 %v559, 1.442695
      %v566 = vpow.pop %v565
      %v567 = vmul.f32 %v560, 1.442695
      %v568 = vpow.pop %v567
      %v569 = vsel %vm444, %v562, 0.0
      %570 = vadd.xlane.f32.xlu0 %v569
      %v571 = vpop.xlane.xlu0 %570
      %v572 = vsel %vm444, %v564, 0.0
      %573 = vadd.xlane.f32.xlu0 %v572
      %v574 = vpop.xlane.xlu0 %573
      %v575 = vsel %vm444, %v566, 0.0
      %576 = vadd.xlane.f32.xlu0 %v575
      %v577 = vpop.xlane.xlu0 %576
      %v578 = vsel %vm444, %v568, 0.0
      %579 = vadd.xlane.f32.xlu0 %v578
      %v580 = vpop.xlane.xlu0 %579
      %v581 = vrcp.pop %v571
      %v582 = vmul.f32 %v571, %v581
      %v583 = vsub.f32 1.0, %v582
      %v584 = vmul.f32 %v581, %v583
      %v585 = vadd.f32 %v581, %v584
      %vm586 = vweird.f32 %v571
      %vm587 = vweird.f32 %v581
      %vm588 = vmor %vm586, %vm587
      %v589 = vsel %vm588, %v581, %v585
      %v590 = vand.u32 2147483647, %v571
      %vm591 = vcmp.eq.f32.partialorder %v590, 8.507059e+37
      %v592 = vand.u32 %v571, 2147483648
      %v593 = vor.u32 1.1754944e-38, %v592
      %v594 = vsel %vm591, %v593, %v589
      %v595 = vrcp.pop %v574
      %v596 = vmul.f32 %v574, %v595
      %v597 = vsub.f32 1.0, %v596
      %v598 = vmul.f32 %v595, %v597
      %v599 = vadd.f32 %v595, %v598
      %vm600 = vweird.f32 %v574
      %vm601 = vweird.f32 %v595
      %vm602 = vmor %vm600, %vm601
      %v603 = vsel %vm602, %v595, %v599
      %v604 = vand.u32 2147483647, %v574
      %vm605 = vcmp.eq.f32.partialorder %v604, 8.507059e+37
      %v606 = vand.u32 %v574, 2147483648
      %v607 = vor.u32 1.1754944e-38, %v606
      %v608 = vsel %vm605, %v607, %v603
      %v609 = vrcp.pop %v577
      %v610 = vmul.f32 %v577, %v609
      %v611 = vsub.f32 1.0, %v610
      %v612 = vmul.f32 %v609, %v611
      %v613 = vadd.f32 %v609, %v612
      %vm614 = vweird.f32 %v577
      %vm615 = vweird.f32 %v609
      %vm616 = vmor %vm614, %vm615
      %v617 = vsel %vm616, %v609, %v613
      %v618 = vand.u32 2147483647, %v577
      %vm619 = vcmp.eq.f32.partialorder %v618, 8.507059e+37
      %v620 = vand.u32 %v577, 2147483648
      %v621 = vor.u32 1.1754944e-38, %v620
      %v622 = vsel %vm619, %v621, %v617
      %v623 = vrcp.pop %v580
      %v624 = vmul.f32 %v580, %v623
      %v625 = vsub.f32 1.0, %v624
      %v626 = vmul.f32 %v623, %v625
      %v627 = vadd.f32 %v623, %v626
      %vm628 = vweird.f32 %v580
      %vm629 = vweird.f32 %v623
      %vm630 = vmor %vm628, %vm629
      %v631 = vsel %vm630, %v623, %v627
      %v632 = vand.u32 2147483647, %v580
      %vm633 = vcmp.eq.f32.partialorder %v632, 8.507059e+37
      %v634 = vand.u32 %v580, 2147483648
      %v635 = vor.u32 1.1754944e-38, %v634
      %v636 = vsel %vm633, %v635, %v631
      %v637 = vmul.f32 %v562, %v594
      %v638 = vmul.f32 %v564, %v608
      %v639 = vmul.f32 %v566, %v622
      %v640 = vmul.f32 %v568, %v636
      %v642 = vsel %vm444, %v287, 0
      %v645 = vsel %vm444, %v637, 0
      %647 = vmatpush.xpose.msra.mxu0 0.0
      %648 = vmatpush.xpose.msra.mxu0 0.0
      %649 = vmatpush.xpose.msra.mxu0 0.0
      %650 = vmatpush.xpose.msra.mxu0 0.0
      %651 = vmatpush.xpose.msra.mxu0 0.0
      %652 = vmatpush.xpose.msra.mxu0 0.0
      %653 = vmatpush.xpose.msra.mxu0 0.0
      %654 = vmatpush.xpose.msra.mxu0 0.0
      %655 = vmatpush.xpose.msra.mxu0 0.0
      %656 = vmatpush.xpose.msra.mxu0 0.0
      %657 = vmatpush.xpose.msra.mxu0 0.0
      %658 = vmatpush.xpose.msra.mxu0 0.0
      %659 = vmatpush.xpose.msra.mxu0 0.0
      %660 = vmatpush.xpose.msra.mxu0 0.0
      %661 = vmatpush.xpose.msra.mxu0 0.0
      %662 = vmatpush.xpose.msra.mxu0 %v645
      %663 = vmatmul.f32.gmra.mxu0 %v642
      %v664 = vpop.f32.mrf.mxu0
      %v665 = vadd.f32 0.0, %v664
      %666 = vdwg.mxu0
      %v668 = vsel %vm444, %v290, 0
      %v671 = vsel %vm444, %v638, 0
      %673 = vmatpush.xpose.msra.mxu0 0.0
      %674 = vmatpush.xpose.msra.mxu0 0.0
      %675 = vmatpush.xpose.msra.mxu0 0.0
      %676 = vmatpush.xpose.msra.mxu0 0.0
      %677 = vmatpush.xpose.msra.mxu0 0.0
      %678 = vmatpush.xpose.msra.mxu0 0.0
      %679 = vmatpush.xpose.msra.mxu0 0.0
      %680 = vmatpush.xpose.msra.mxu0 0.0
      %681 = vmatpush.xpose.msra.mxu0 0.0
      %682 = vmatpush.xpose.msra.mxu0 0.0
      %683 = vmatpush.xpose.msra.mxu0 0.0
      %684 = vmatpush.xpose.msra.mxu0 0.0
      %685 = vmatpush.xpose.msra.mxu0 0.0
      %686 = vmatpush.xpose.msra.mxu0 0.0
      %687 = vmatpush.xpose.msra.mxu0 0.0
      %688 = vmatpush.xpose.msra.mxu0 %v671
      %689 = vmatmul.f32.gmra.mxu0 %v668
      %v690 = vpop.f32.mrf.mxu0
      %v691 = vadd.f32 0.0, %v690
      %692 = vdwg.mxu0
      %v694 = vsel %vm444, %v293, 0
      %v697 = vsel %vm444, %v639, 0
      %699 = vmatpush.xpose.msra.mxu0 0.0
      %700 = vmatpush.xpose.msra.mxu0 0.0
      %701 = vmatpush.xpose.msra.mxu0 0.0
      %702 = vmatpush.xpose.msra.mxu0 0.0
      %703 = vmatpush.xpose.msra.mxu0 0.0
      %704 = vmatpush.xpose.msra.mxu0 0.0
      %705 = vmatpush.xpose.msra.mxu0 0.0
      %706 = vmatpush.xpose.msra.mxu0 0.0
      %707 = vmatpush.xpose.msra.mxu0 0.0
      %708 = vmatpush.xpose.msra.mxu0 0.0
      %709 = vmatpush.xpose.msra.mxu0 0.0
      %710 = vmatpush.xpose.msra.mxu0 0.0
      %711 = vmatpush.xpose.msra.mxu0 0.0
      %712 = vmatpush.xpose.msra.mxu0 0.0
      %713 = vmatpush.xpose.msra.mxu0 0.0
      %714 = vmatpush.xpose.msra.mxu0 %v697
      %715 = vmatmul.f32.gmra.mxu0 %v694
      %v716 = vpop.f32.mrf.mxu0
      %v717 = vadd.f32 0.0, %v716
      %718 = vdwg.mxu0
      %v720 = vsel %vm444, %v296, 0
      %v723 = vsel %vm444, %v640, 0
      %725 = vmatpush.xpose.msra.mxu0 0.0
      %726 = vmatpush.xpose.msra.mxu0 0.0
      %727 = vmatpush.xpose.msra.mxu0 0.0
      %728 = vmatpush.xpose.msra.mxu0 0.0
      %729 = vmatpush.xpose.msra.mxu0 0.0
      %730 = vmatpush.xpose.msra.mxu0 0.0
      %731 = vmatpush.xpose.msra.mxu0 0.0
      %732 = vmatpush.xpose.msra.mxu0 0.0
      %733 = vmatpush.xpose.msra.mxu0 0.0
      %734 = vmatpush.xpose.msra.mxu0 0.0
      %735 = vmatpush.xpose.msra.mxu0 0.0
      %736 = vmatpush.xpose.msra.mxu0 0.0
      %737 = vmatpush.xpose.msra.mxu0 0.0
      %738 = vmatpush.xpose.msra.mxu0 0.0
      %739 = vmatpush.xpose.msra.mxu0 0.0
      %740 = vmatpush.xpose.msra.mxu0 %v723
      %741 = vmatmul.f32.gmra.mxu0 %v720
      %v742 = vpop.f32.mrf.mxu0
      %v743 = vadd.f32 0.0, %v742
      %744 = vdwg.mxu0
      %v745 = vld [vmem:[%s2] sm:$0xff]
      %v746 = vld [vmem:[%s2 + $0x8] sm:$0xff]
      %v747 = vld [vmem:[%s2 + $0x10] sm:$0xff]
      %v748 = vld [vmem:[%s2 + $0x18] sm:$0xff]
      %vm749 = vcmask 261120
      %v751 = vsel %vm749, %v745, 0
      %v754 = vsel %vm749, %v746, 0
      %v757 = vsel %vm749, %v747, 0
      %v760 = vsel %vm749, %v748, 0
      %762 = vmatpush.msra.mxu0 0.0
      %763 = vmatpush.msra.mxu0 0.0
      %764 = vmatpush.msra.mxu0 0.0
      %765 = vmatpush.msra.mxu0 0.0
      %766 = vmatpush.msra.mxu0 0.0
      %767 = vmatpush.msra.mxu0 0.0
      %768 = vmatpush.msra.mxu0 0.0
      %769 = vmatpush.msra.mxu0 0.0
      %770 = vmatpush.msra.mxu0 0.0
      %771 = vmatpush.msra.mxu0 0.0
      %772 = vmatpush.msra.mxu0 0.0
      %773 = vmatpush.msra.mxu0 0.0
      %774 = vmatpush.msra.mxu0 %v743
      %775 = vmatpush.msra.mxu0 %v717
      %776 = vmatpush.msra.mxu0 %v691
      %777 = vmatpush.msra.mxu0 %v665
      %778 = vmatmul.f32.gmra.mxu0 %v751
      %v779 = vpop.f32.mrf.mxu0
      %v780 = vadd.f32 %v299, %v779
      %781 = vmatmul.f32.gmra.mxu0 %v754
      %v782 = vpop.f32.mrf.mxu0
      %v783 = vadd.f32 %v302, %v782
      %784 = vmatmul.f32.gmra.mxu0 %v757
      %v785 = vpop.f32.mrf.mxu0
      %v786 = vadd.f32 %v305, %v785
      %787 = vmatmul.f32.gmra.mxu0 %v760
      %v788 = vpop.f32.mrf.mxu0
      %v789 = vadd.f32 %v308, %v788
      %790 = vdwg.mxu0
      %791 = vst.msk [vmem:[%s170] sm:$0xff] %vm444, %v780
      %792 = vst.msk [vmem:[%s170 + $0x8] sm:$0xff] %vm444, %v783
      %793 = vst.msk [vmem:[%s170 + $0x10] sm:$0xff] %vm444, %v786
      %794 = vst.msk [vmem:[%s170 + $0x18] sm:$0xff] %vm444, %v789
      %p795 = scmp.lt.s32.totalorder %s14, 1
      %s796 = scalar_select %p795, %s14, 1
      %s797 = smul.addr %s796, 4
      %s798 = smul.addr %s797, 8
      %s799 = scalar_lea.vmem %s3, %s798
      // Predicated region
      $region33: #{tpu_custom_call.1} parent=31 // pred_check
        %p800 = pneg %p100
      $region34: #{tpu_custom_call.1} parent=31 // pred_check_branch
        %802 = sbr.rel (%p800) target = $region36
      $region35: #{tpu_custom_call.1} parent=31 // pred_region
        _
      $region36: #{tpu_custom_call.1} parent=31 // pred_fallthru
        _
    $region32: #{tpu_custom_call.1} parent=5 // pred_fallthru
      _
    %p803 = scmp.le.s32.totalorder 2, %s9
    // Predicated region
    $region37: #{tpu_custom_call.1} parent=5 // pred_check
      %p804 = pneg %p803
    $region38: #{tpu_custom_call.1} parent=5 // pred_check_branch
      %806 = sbr.rel (%p804) target = $region40
    $region39: #{tpu_custom_call.1} parent=5 // pred_region
      %s807 = ssub.s32 %s9, 2
      // Predicated region
      $region41: #{tpu_custom_call.1} parent=39 // pred_check
        %p808 = pneg %p106
      $region42: #{tpu_custom_call.1} parent=39 // pred_check_branch
        %810 = sbr.rel (%p808) target = $region44
      $region43: #{tpu_custom_call.1} parent=39 // pred_region
        %p811 = scmp.lt.s32.totalorder %s15, 1
        %s812 = scalar_select %p811, %s15, 1
        %s813 = smul.addr %s812, 4
        %s814 = smul.addr %s813, 8
        %s815 = scalar_lea.vmem %s3, %s814
      $region44: #{tpu_custom_call.1} parent=39 // pred_fallthru
        _
    $region40: #{tpu_custom_call.1} parent=5 // pred_fallthru
      _
  $region6: #{tpu_custom_call.1} parent=0 // loop_footer
    %s13 = sadd.s32 1, %s9
  $region7: #{tpu_custom_call.1} parent=0 // loop_footer_branch
    %8 = sbr.rel target = $region3
  $region8: #{tpu_custom_call.1} parent=0 // loop_exit
    _

</llo_original>
